<compile_context>
chip_gen: v5e
topology: v5e:2x2
jax: 0.10.0
libtpu: 0.0.40
codegen_flags: <defaults>
</compile_context>

<pallas_src>
import jax
import jax.numpy as jnp
from jax.experimental import pallas as pl
from jax.experimental.pallas import tpu as pltpu

_LANES = 128          # vreg lane width
_SUBLANES = 8         # vreg sublane height (f32)
_ROW_TILE = 1024      # (1024, 128) f32 tile = 512 KiB; ~85% HBM roofline when tiled


def _copy_kernel(w_ref, o_ref):
    # Forward pass of SynthesizedImage: return self.weight (elementwise copy).
    o_ref[...] = w_ref[...]


def synthesized_image_forward(weight: jax.Array) -> jax.Array:
    """Pallas equivalent of SynthesizedImage.forward(): returns the weight.

    NOTE: in a real Gatys pipeline you would just `return weight` (zero HBM
    traffic); the pallas_call below exists only to keep a kernel boundary and
    is laid out to make that copy as cheap as possible.
    """
    n = weight.size

    if n % (_LANES * _SUBLANES) == 0:
        rows = n // _LANES
        flat = weight.reshape(rows, _LANES)   # lane-dense 2D slab

        if rows <= _ROW_TILE:
            # Small tensor: whole slab in one VMEM block, grid=() -> no
            # grid-step overhead, unmasked full-width vector loads/stores.
            out = pl.pallas_call(
                _copy_kernel,
                out_shape=jax.ShapeDtypeStruct((rows, _LANES), weight.dtype),
                in_specs=[pl.BlockSpec(memory_space=pltpu.MemorySpace.VMEM)],
                out_specs=pl.BlockSpec(memory_space=pltpu.MemorySpace.VMEM),
            )(flat)
        else:
            # Large image: tile the row axis.  2 buffers x (in + out) tiles
            # = 4 * 512 KiB = 2 MiB of VMEM -> safe on v5e/v6e/v7x.  Parallel
            # axis lets v7x shard the mem-bound copy across both TensorCores.
            grid = (pl.cdiv(rows, _ROW_TILE),)
            out = pl.pallas_call(
                _copy_kernel,
                out_shape=jax.ShapeDtypeStruct((rows, _LANES), weight.dtype),
                grid=grid,
                in_specs=[pl.BlockSpec((_ROW_TILE, _LANES), lambda i: (i, 0))],
                out_specs=pl.BlockSpec((_ROW_TILE, _LANES), lambda i: (i, 0)),
                compiler_params=pltpu.CompilerParams(
                    dimension_semantics=("parallel",)
                ),
            )(flat)
        return out.reshape(weight.shape)

    # Fallback for sizes not a multiple of 8*128: a full-array block equals the
    # array dims, which satisfies the (8, 128) tiling rule for any shape.
    return pl.pallas_call(
        _copy_kernel,
        out_shape=jax.ShapeDtypeStruct(weight.shape, weight.dtype),
        in_specs=[pl.BlockSpec(memory_space=pltpu.MemorySpace.VMEM)],
        out_specs=pl.BlockSpec(memory_space=pltpu.MemorySpace.VMEM),
    )(weight)


class SynthesizedImage:
    """JAX/Pallas port of the PyTorch SynthesizedImage module."""

    def __init__(self, img_shape, key=None):
        if key is None:
            key = jax.random.PRNGKey(0)
        # torch.rand(*img_shape) -> uniform [0, 1).  Deterministic JAX init;
        # not bit-identical to PyTorch's RNG, but the same distribution.
        self.weight = jax.random.uniform(
            key, shape=tuple(img_shape), dtype=jnp.float32
        )
        self._forward = jax.jit(synthesized_image_forward)

    def __call__(self):
        # Production note: returning self.weight directly is the true optimum;
        # the Pallas path is kept so the kernel is exercised.
        return self._forward(self.weight)


if __name__ == "__main__":
    # Small image shape consistent with the module: NCHW = (2, 4, 16, 16).
    img_shape = (2, 4, 16, 16)
    key = jax.random.PRNGKey(0)

    module = SynthesizedImage(img_shape, key=key)
    out = module()
    out = jax.block_until_ready(out)

    # Forward must return exactly the parameter tensor.
    assert out.shape == img_shape, (out.shape, img_shape)
    assert out.dtype == jnp.float32
    assert bool(jnp.allclose(out, module.weight)), "output != weight"

    print("KERNEL_OK")
</pallas_src>

<mosaic_0001>
module attributes {stable_mosaic.version = 11 : i64} {
  func.func @_copy_kernel(%arg0: memref<16x128xf32, #tpu.memory_space<vmem>>, %arg1: memref<16x128xf32, #tpu.memory_space<vmem>>) attributes {dimension_semantics = [], scalar_prefetch = 0 : i64, scratch_operands = 0 : i64, tpu.core_type = #tpu.core_type<tc>} {
    %c0 = arith.constant 0 : index
    %c0_0 = arith.constant 0 : index
    %0 = vector.load %arg0[%c0, %c0_0] : memref<16x128xf32, #tpu.memory_space<vmem>>, vector<16x128xf32>
    %c0_1 = arith.constant 0 : index
    %c0_2 = arith.constant 0 : index
    %1 = vector.load %arg1[%c0_1, %c0_2] : memref<16x128xf32, #tpu.memory_space<vmem>>, vector<16x128xf32>
    tpu.vector_store %arg1[%c0_1, %c0_2], %0 {strides = array<i32>} : memref<16x128xf32, #tpu.memory_space<vmem>>, vector<16x128xf32>,
    return
  }
}

</mosaic_0001>

<llo_original>
// kernel: synthesized_image_forward.1
$region0: #{synthesized_image_forward.1}
  #allocation0 [shape = 'u32[]', space=smem, size = 0x4, offset = 0x4, fixed_abs, tag = 'smem constant byte address 0x4 - core index']
  #allocation1 [shape = 'u32[72,128]{1,0:T(1,128)}', space=vmem, size = 0x9000, scoped, tag = 'internal scratch']
  %s0 = inlined_call_operand.vmem [shape: f32[16,128], index: 0, kind: input, shape index: {}]
  %s1 = inlined_call_operand.vmem [shape: f32[16,128], index: 1, kind: output, shape index: {}]
  %s2 = sld [smem:[#allocation0]]
  $region14: #{synthesized_image_forward.1} parent=0
    _
  %s4 = ssub.s32 1, %s2
  %s5 = scalar_select 0, %s4, %s2
  // Predicated region
  $region2: #{synthesized_image_forward.1} parent=0 // pred_check
    _
  $region3: #{synthesized_image_forward.1} parent=0 // pred_check_branch
    %7 = sbr.rel (0) target = $region5
  $region4: #{synthesized_image_forward.1} parent=0 // pred_region
    _
  $region5: #{synthesized_image_forward.1} parent=0 // pred_fallthru
    _
  %v8 = vld [vmem:[%s0] sm:$0xff]
  %v9 = vld [vmem:[%s0 + $0x8] sm:$0xff]
  %10 = vst [vmem:[%s1] sm:$0xff] %v8
  %11 = vst [vmem:[%s1 + $0x8] sm:$0xff] %v9
  // Predicated region
  $region6: #{synthesized_image_forward.1} parent=0 // pred_check
    _
  $region7: #{synthesized_image_forward.1} parent=0 // pred_check_branch
    %13 = sbr.rel (0) target = $region9
  $region8: #{synthesized_image_forward.1} parent=0 // pred_region
    _
  $region9: #{synthesized_image_forward.1} parent=0 // pred_fallthru
    _
  // Predicated region
  $region10: #{synthesized_image_forward.1} parent=0 // pred_check
    _
  $region11: #{synthesized_image_forward.1} parent=0 // pred_check_branch
    %15 = sbr.rel (0) target = $region13
  $region12: #{synthesized_image_forward.1} parent=0 // pred_region
    _
  $region13: #{synthesized_image_forward.1} parent=0 // pred_fallthru
    _

</llo_original>
